<compile_context>
chip_gen: v7x
topology: tpu7x:2x2x1
jax: 0.10.0
libtpu: 0.0.40
codegen_flags: <defaults>
</compile_context>

<pallas_src>
import functools

import numpy as np
import jax
import jax.numpy as jnp
from jax import lax
from jax.experimental import pallas as pl
from jax.experimental.pallas import tpu as pltpu


# ----------------------------------------------------------------------------- #
# Tile-size helpers
# ----------------------------------------------------------------------------- #
def _pick_lane_tile(n, target=2048):
    """Largest multiple of 128 that divides n and is <= target (else n)."""
    if n <= target:
        return n
    t = (target // 128) * 128
    while t >= 128:
        if n % t == 0:
            return t
        t -= 128
    return n


def _pick_row_tile(rows, target=2048):
    """Largest multiple of 8 that divides rows and is <= target (else rows)."""
    if rows <= target:
        return rows
    t = (target // 8) * 8
    while t >= 8:
        if rows % t == 0:
            return t
        t -= 8
    return rows


# ----------------------------------------------------------------------------- #
# Pallas kernels
# ----------------------------------------------------------------------------- #
def _logit_loss_kernel(ys_ref, yt_ref, lbl_ref, w_ref, out_ref,
                       cacc_ref, cnt_ref, ccn_ref,
                       mcnt_ref, uc_ref, lc_ref, lsum_ref,
                       *, num_classes, temp):
    """Per-batch-element distill_logit_loss (loss_center_b + loss_sim_b).

    Grid = (B, phase, n_tiles).  phase 0 accumulates class statistics over the
    N tiles; phase 1 finalizes centers (at t==0) and accumulates the cosine-sim
    MSE over the N tiles; the per-batch total is written at the last step.
    """
    ph = pl.program_id(1)
    t = pl.program_id(2)
    nt = pl.num_programs(2)

    C = ys_ref.shape[1]
    tn = ys_ref.shape[2]
    inv_temp = 1.0 / temp
    eps2 = 1e-16  # (1e-8)^2 : 1/max(||x||, 1e-8) == rsqrt(max(||x||^2, 1e-16))

    # ---- init scratch at the very first step of each batch element ----------- #
    @pl.when(jnp.logical_and(ph == 0, t == 0))
    def _init():
        cacc_ref[...] = jnp.zeros_like(cacc_ref)
        cnt_ref[...] = jnp.zeros_like(cnt_ref)
        mcnt_ref[...] = jnp.zeros_like(mcnt_ref)
        lsum_ref[...] = jnp.zeros_like(lsum_ref)

    lbl = lbl_ref[0]                                   # (1, tn) int32
    w = w_ref[0]                                       # (1, tn) f32
    valid = jnp.logical_and(w > 0, lbl != 255)         # (1, tn)
    valid_f = valid.astype(jnp.float32)

    y_t = yt_ref[0].astype(jnp.float32)                # (C, tn)  points on lanes
    y_s = ys_ref[0].astype(jnp.float32)                # (C, tn)

    # ---- phase 0: accumulate fused class sums / counts ----------------------- #
    @pl.when(ph == 0)
    def _accumulate_centers():
        cls = lax.broadcasted_iota(jnp.int32, (num_classes, tn), 0)
        m = jnp.logical_and(jnp.logical_and(lbl == cls, valid),
                            cls != 0).astype(jnp.float32)          # (U, tn)
        y_cat = jnp.concatenate([y_t, y_s], axis=0)                # (2C, tn)
        # fused teacher+student center sums: (U, tn) . (2C, tn)^T -> (U, 2C)
        cacc_ref[...] += lax.dot_general(
            m, y_cat, (((1,), (1,)), ((), ())),
            preferred_element_type=jnp.float32)
        cnt_ref[...] += jnp.sum(m, axis=1, keepdims=True)          # (U, 1)
        mcnt_ref[...] += jnp.sum(valid_f)                          # valid points

    # ---- phase 1, first tile: finalize centers, KL loss, normalized centers -- #
    @pl.when(jnp.logical_and(ph == 1, t == 0))
    def _finalize_centers():
        counts = cnt_ref[...]                                      # (U, 1)
        present = (counts > 0.0).astype(jnp.float32)               # (U, 1)
        u_count = jnp.sum(present, keepdims=True)                  # (1, 1)
        inv_counts = 1.0 / jnp.maximum(counts, 1.0)                # reused below
        centers = cacc_ref[...] * inv_counts                       # (U, 2C)
        yt_c = centers[:, :C]                                      # (U, C)
        ys_c = centers[:, C:]                                      # (U, C)

        def _log_softmax(x):
            x = x - jnp.max(x, axis=1, keepdims=True)
            return x - jnp.log(jnp.sum(jnp.exp(x), axis=1, keepdims=True))

        lpt = _log_softmax(yt_c * inv_temp)
        lps = _log_softmax(ys_c * inv_temp)
        p_t = jnp.exp(lpt)
        kl = jnp.sum(p_t * (lpt - lps), axis=1, keepdims=True)     # (U, 1)
        lc_ref[...] = ((temp * temp) * jnp.sum(kl * present, keepdims=True)
                       / jnp.maximum(u_count, 1.0))
        uc_ref[...] = u_count

        def _rnormalize(x):
            ss = jnp.sum(x * x, axis=1, keepdims=True)
            return x * lax.rsqrt(jnp.maximum(ss, eps2))

        # fused normalized centers [ct_n | -cs_n]; rows of absent classes (and
        # class 0) are exactly zero, so they drop out of the sim loss naturally.
        ccn_ref[...] = jnp.concatenate(
            [_rnormalize(yt_c), -_rnormalize(ys_c)], axis=1)       # (U, 2C)

    # ---- phase 1: accumulate cosine-similarity MSE over this N tile ---------- #
    @pl.when(ph == 1)
    def _accumulate_sim():
        ss_t = jnp.sum(y_t * y_t, axis=0, keepdims=True)           # (1, tn)
        ss_s = jnp.sum(y_s * y_s, axis=0, keepdims=True)
        # zero out invalid points so they contribute nothing to the sum below
        yt_n = y_t * (lax.rsqrt(jnp.maximum(ss_t, eps2)) * valid_f)
        ys_n = y_s * (lax.rsqrt(jnp.maximum(ss_s, eps2)) * valid_f)
        y_catn = jnp.concatenate([yt_n, ys_n], axis=0)             # (2C, tn)
        # (U, 2C) . (2C, tn) -> (U, tn) == cos_t - cos_s  (fused, single dot)
        diff = lax.dot_general(ccn_ref[...], y_catn,
                               (((1,), (0,)), ((), ())),
                               preferred_element_type=jnp.float32)
        lsum_ref[...] += jnp.sum(diff * diff)                      # VPU reduce

    # ---- last step for this batch element: write the per-batch total --------- #
    @pl.when(jnp.logical_and(ph == 1, t == nt - 1))
    def _write_out():
        denom = jnp.maximum(mcnt_ref[...] * uc_ref[...], 1.0)      # (1, 1)
        total = lc_ref[...] + lsum_ref[...] / denom                # (1, 1)
        out_ref[...] = jnp.broadcast_to(total.reshape(1, 1, 1), out_ref.shape)


def _feat_mse_kernel(a_ref, b_ref, out_ref):
    """Accumulated sum of squared differences (mean taken in the wrapper)."""
    @pl.when(pl.program_id(0) == 0)
    def _():
        out_ref[...] = jnp.zeros_like(out_ref)
    d = a_ref[...].astype(jnp.float32) - b_ref[...].astype(jnp.float32)
    out_ref[...] += jnp.sum(d * d)


# ----------------------------------------------------------------------------- #
# Wrappers
# ----------------------------------------------------------------------------- #
def _logit_loss_pallas(y_s, y_t, lbl, w, *, num_classes, temp, max_tile=2048):
    B, C, N = y_s.shape
    tn = _pick_lane_tile(N, max_tile)
    nt = N // tn

    kernel = functools.partial(_logit_loss_kernel,
                               num_classes=num_classes, temp=float(temp))
    out = pl.pallas_call(
        kernel,
        out_shape=jax.ShapeDtypeStruct((B, 8, 128), jnp.float32),
        grid=(B, 2, nt),
        in_specs=[
            pl.BlockSpec((1, C, tn), lambda b, p, t: (b, 0, t)),
            pl.BlockSpec((1, C, tn), lambda b, p, t: (b, 0, t)),
            pl.BlockSpec((1, 1, tn), lambda b, p, t: (b, 0, t)),
            pl.BlockSpec((1, 1, tn), lambda b, p, t: (b, 0, t)),
        ],
        out_specs=pl.BlockSpec((1, 8, 128), lambda b, p, t: (b, 0, 0)),
        scratch_shapes=[
            pltpu.VMEM((num_classes, 2 * C), jnp.float32),   # fused center sums
            pltpu.VMEM((num_classes, 1), jnp.float32),       # class counts
            pltpu.VMEM((num_classes, 2 * C), jnp.float32),   # normalized centers
            pltpu.VMEM((1, 1), jnp.float32),                 # m (valid points)
            pltpu.VMEM((1, 1), jnp.float32),                 # u (present classes)
            pltpu.VMEM((1, 1), jnp.float32),                 # loss_center
            pltpu.VMEM((1, 1), jnp.float32),                 # sum (cos diff)^2
        ],
        compiler_params=pltpu.CompilerParams(
            dimension_semantics=("parallel", "arbitrary", "arbitrary")),
    )(y_s, y_t, lbl, w)
    # (loss_center + loss_sim) summed over batch, divided by B
    return jnp.sum(out[:, 0, 0]) / B


def _feat_mse_pallas(feat_s, feat_t):
    total = int(np.prod(feat_s.shape))
    assert total % 128 == 0, "feature element count must be a multiple of 128"
    rows = total // 128
    a = feat_s.reshape(rows, 128)        # no dtype cast here: stream native dtype
    b = feat_t.reshape(rows, 128)
    tile = _pick_row_tile(rows, 2048)
    out = pl.pallas_call(
        _feat_mse_kernel,
        out_shape=jax.ShapeDtypeStruct((8, 128), jnp.float32),
        grid=(rows // tile,),
        in_specs=[pl.BlockSpec((tile, 128), lambda i: (i, 0)),
                  pl.BlockSpec((tile, 128), lambda i: (i, 0))],
        out_specs=pl.BlockSpec((8, 128), lambda i: (0, 0)),
        compiler_params=pltpu.CompilerParams(dimension_semantics=("arbitrary",)),
    )(a, b)
    return out[0, 0] / total


def distiller_forward(pred_3d, tsdf_feat, pred_3dT, tsdf_featT, label3d, label_weight,
                      *, T=1.0, num_classes=8):
    """Matches Distiller.forward (training mode)."""
    B, C = pred_3d.shape[:2]
    N = int(np.prod(pred_3d.shape[2:]))
    # keep logits in native [B, C, N] layout (no HBM transpose); labels/weights
    # are tiny so the int/float casts here are negligible.
    y_s = pred_3d.reshape(B, C, N)
    y_t = pred_3dT.reshape(B, C, N)
    lbl = label3d.reshape(B, 1, N).astype(jnp.int32)
    w = label_weight.reshape(B, 1, N).astype(jnp.float32)

    loss_distill3d = _logit_loss_pallas(y_s, y_t, lbl, w,
                                        num_classes=num_classes, temp=T)

    loss_distillT = 0.0
    for fs, ft in zip(tsdf_feat, tsdf_featT):
        loss_distillT = loss_distillT + _feat_mse_pallas(fs, ft)
    return loss_distillT / len(tsdf_feat), loss_distill3d


# ----------------------------------------------------------------------------- #
# NumPy reference (mirrors the PyTorch code with boolean indexing / unique)
# ----------------------------------------------------------------------------- #
def _reference_forward(pred_3d, tsdf_feat, pred_3dT, tsdf_featT, label3d, label_weight, T=1.0):
    pred_3d, pred_3dT = np.asarray(pred_3d), np.asarray(pred_3dT)
    label3d, label_weight = np.asarray(label3d), np.asarray(label_weight)
    B, C = pred_3d.shape[:2]
    weight = label_weight & (label3d != 255)
    loss_center, loss_sim = 0.0, 0.0
    for b in range(B):
        w = weight[b].reshape(-1)
        ys = pred_3d[b].reshape(C, -1).T[w]
        yt = pred_3dT[b].reshape(C, -1).T[w]
        lab = label3d[b].reshape(-1)[w]
        uniq = np.unique(lab)
        uniq = uniq[uniq != 0]
        mask = lab[:, None] == uniq[None, :]
        yt_c = (yt[:, None, :] * mask[:, :, None]).sum(0) / mask.sum(0)[:, None]
        ys_c = (ys[:, None, :] * mask[:, :, None]).sum(0) / mask.sum(0)[:, None]

        def lsm(x):
            x = x - x.max(1, keepdims=True)
            return x - np.log(np.exp(x).sum(1, keepdims=True))

        lps, lpt = lsm(ys_c / T), lsm(yt_c / T)
        pt = np.exp(lpt)
        loss_center += ((pt * (lpt - lps)) * T ** 2).sum(-1).mean()

        def cos(a, c):
            an = a / np.maximum(np.linalg.norm(a, axis=-1, keepdims=True), 1e-8)
            cn = c / np.maximum(np.linalg.norm(c, axis=-1, keepdims=True), 1e-8)
            return an @ cn.T

        loss_sim += ((cos(yt, yt_c) - cos(ys, ys_c)) ** 2).mean()
    loss3d = (loss_center + loss_sim) / B
    lossT = np.mean([np.mean((np.asarray(a) - np.asarray(b)) ** 2)
                     for a, b in zip(tsdf_feat, tsdf_featT)])
    return lossT, loss3d


# ----------------------------------------------------------------------------- #
if __name__ == "__main__":
    key = jax.random.PRNGKey(0)
    k1, k2, k3, k4, k5, k6, k7, k8 = jax.random.split(key, 8)

    B, C_logit, H, W = 2, 32, 16, 16
    C_feat, NUM_CLASSES = 4, 8

    pred_3d = jax.random.normal(k1, (B, C_logit, H, W), dtype=jnp.float32)
    pred_3dT = jax.random.normal(k2, (B, C_logit, H, W), dtype=jnp.float32)

    tsdf_feat = [jax.random.normal(k3, (B, C_feat, H, W), dtype=jnp.float32),
                 jax.random.normal(k4, (B, C_feat, H, W), dtype=jnp.float32)]
    tsdf_featT = [jax.random.normal(k5, (B, C_feat, H, W), dtype=jnp.float32),
                  jax.random.normal(k6, (B, C_feat, H, W), dtype=jnp.float32)]

    lab = jax.random.randint(k7, (B, H, W), 0, 10)
    label3d = jnp.where(lab >= NUM_CLASSES, 255, lab).astype(jnp.int32)
    label_weight = jax.random.bernoulli(k8, 0.7, (B, H, W))

    loss_T, loss_3d = distiller_forward(
        pred_3d, tsdf_feat, pred_3dT, tsdf_featT, label3d, label_weight,
        T=1.0, num_classes=NUM_CLASSES)
    loss_T = jax.block_until_ready(loss_T)
    loss_3d = jax.block_until_ready(loss_3d)

    ref_T, ref_3d = _reference_forward(
        pred_3d, tsdf_feat, pred_3dT, tsdf_featT, label3d, label_weight, T=1.0)

    np.testing.assert_allclose(float(loss_T), float(ref_T), rtol=1e-2, atol=1e-4)
    np.testing.assert_allclose(float(loss_3d), float(ref_3d), rtol=1e-2, atol=1e-4)

    print("KERNEL_OK")
</pallas_src>

<mosaic_0001>
module attributes {stable_mosaic.version = 11 : i64} {
  func.func @_logit_loss_kernel(%arg0: i32, %arg1: i32, %arg2: i32, %arg3: memref<1x32x256xf32, #tpu.memory_space<vmem>>, %arg4: memref<1x32x256xf32, #tpu.memory_space<vmem>>, %arg5: memref<1x1x256xi32, #tpu.memory_space<vmem>>, %arg6: memref<1x1x256xf32, #tpu.memory_space<vmem>>, %arg7: memref<1x8x128xf32, #tpu.memory_space<vmem>>, %arg8: memref<8x64xf32, #tpu.memory_space<vmem>>, %arg9: memref<8x1xf32, #tpu.memory_space<vmem>>, %arg10: memref<8x64xf32, #tpu.memory_space<vmem>>, %arg11: memref<1x1xf32, #tpu.memory_space<vmem>>, %arg12: memref<1x1xf32, #tpu.memory_space<vmem>>, %arg13: memref<1x1xf32, #tpu.memory_space<vmem>>, %arg14: memref<1x1xf32, #tpu.memory_space<vmem>>) attributes {dimension_semantics = [#tpu.dimension_semantics<parallel>, #tpu.dimension_semantics<arbitrary>, #tpu.dimension_semantics<arbitrary>], iteration_bounds = array<i64: 2, 2, 1>, scalar_prefetch = 0 : i64, scratch_operands = 7 : i64, tpu.core_type = #tpu.core_type<tc>, window_params = [{transform_indices = @transform_0, window_bounds = array<i64: 1, 32, 256>}, {transform_indices = @transform_1, window_bounds = array<i64: 1, 32, 256>}, {transform_indices = @transform_2, window_bounds = array<i64: 1, 1, 256>}, {transform_indices = @transform_3, window_bounds = array<i64: 1, 1, 256>}, {transform_indices = @transform_4, window_bounds = array<i64: 1, 8, 128>}]} {
    %c0_i32 = arith.constant 0 : i32
    %0 = arith.cmpi eq, %arg1, %c0_i32 : i32
    %c0_i32_0 = arith.constant 0 : i32
    %1 = arith.cmpi eq, %arg2, %c0_i32_0 : i32
    %2 = arith.andi %0, %1 : i1
    %3 = arith.extui %2 : i1 to i32
    %c0_i32_1 = arith.constant 0 : i32
    %4 = arith.cmpi ne, %3, %c0_i32_1 : i32
    scf.if %4 {
      %cst_22 = arith.constant 0.000000e+00 : f32
      %36 = vector.broadcast %cst_22 : f32 to vector<8x64xf32>
      %c0_23 = arith.constant 0 : index
      %c0_24 = arith.constant 0 : index
      %37 = vector.load %arg8[%c0_23, %c0_24] : memref<8x64xf32, #tpu.memory_space<vmem>>, vector<8x64xf32>
      tpu.vector_store %arg8[%c0_23, %c0_24], %36 {strides = array<i32>} : memref<8x64xf32, #tpu.memory_space<vmem>>, vector<8x64xf32>,
      %cst_25 = arith.constant 0.000000e+00 : f32
      %38 = vector.broadcast %cst_25 : f32 to vector<8x1xf32>
      %c0_26 = arith.constant 0 : index
      %c0_27 = arith.constant 0 : index
      %39 = vector.load %arg9[%c0_26, %c0_27] : memref<8x1xf32, #tpu.memory_space<vmem>>, vector<8x1xf32>
      tpu.vector_store %arg9[%c0_26, %c0_27], %38 {strides = array<i32>} : memref<8x1xf32, #tpu.memory_space<vmem>>, vector<8x1xf32>,
      %cst_28 = arith.constant 0.000000e+00 : f32
      %40 = vector.broadcast %cst_28 : f32 to vector<1x1xf32>
      %c0_29 = arith.constant 0 : index
      %c0_30 = arith.constant 0 : index
      %41 = vector.load %arg11[%c0_29, %c0_30] : memref<1x1xf32, #tpu.memory_space<vmem>>, vector<1x1xf32>
      tpu.vector_store %arg11[%c0_29, %c0_30], %40 {strides = array<i32>} : memref<1x1xf32, #tpu.memory_space<vmem>>, vector<1x1xf32>,
      %cst_31 = arith.constant 0.000000e+00 : f32
      %42 = vector.broadcast %cst_31 : f32 to vector<1x1xf32>
      %c0_32 = arith.constant 0 : index
      %c0_33 = arith.constant 0 : index
      %43 = vector.load %arg14[%c0_32, %c0_33] : memref<1x1xf32, #tpu.memory_space<vmem>>, vector<1x1xf32>
      tpu.vector_store %arg14[%c0_32, %c0_33], %42 {strides = array<i32>} : memref<1x1xf32, #tpu.memory_space<vmem>>, vector<1x1xf32>,
    } else {
    }
    %c0 = arith.constant 0 : index
    %c0_2 = arith.constant 0 : index
    %c0_3 = arith.constant 0 : index
    %5 = vector.load %arg5[%c0, %c0_2, %c0_3] : memref<1x1x256xi32, #tpu.memory_space<vmem>>, vector<1x1x256xi32>
    %6 = vector.shape_cast %5 : vector<1x1x256xi32> to vector<1x256xi32>
    %c0_4 = arith.constant 0 : index
    %c0_5 = arith.constant 0 : index
    %c0_6 = arith.constant 0 : index
    %7 = vector.load %arg6[%c0_4, %c0_5, %c0_6] : memref<1x1x256xf32, #tpu.memory_space<vmem>>, vector<1x1x256xf32>
    %8 = vector.shape_cast %7 : vector<1x1x256xf32> to vector<1x256xf32>
    %cst = arith.constant 0.000000e+00 : f32
    %9 = vector.broadcast %cst : f32 to vector<1x256xf32>
    %10 = arith.cmpf ogt, %8, %9 : vector<1x256xf32>
    %c255_i32 = arith.constant 255 : i32
    %11 = vector.broadcast %c255_i32 : i32 to vector<1x256xi32>
    %12 = arith.cmpi ne, %6, %11 : vector<1x256xi32>
    %13 = arith.andi %10, %12 : vector<1x256xi1>
    %14 = arith.extui %13 : vector<1x256xi1> to vector<1x256xi32>
    %15 = arith.sitofp %14 : vector<1x256xi32> to vector<1x256xf32>
    %c0_7 = arith.constant 0 : index
    %c0_8 = arith.constant 0 : index
    %c0_9 = arith.constant 0 : index
    %16 = vector.load %arg4[%c0_7, %c0_8, %c0_9] : memref<1x32x256xf32, #tpu.memory_space<vmem>>, vector<1x32x256xf32>
    %17 = vector.shape_cast %16 : vector<1x32x256xf32> to vector<32x256xf32>
    %c0_10 = arith.constant 0 : index
    %c0_11 = arith.constant 0 : index
    %c0_12 = arith.constant 0 : index
    %18 = vector.load %arg3[%c0_10, %c0_11, %c0_12] : memref<1x32x256xf32, #tpu.memory_space<vmem>>, vector<1x32x256xf32>
    %19 = vector.shape_cast %18 : vector<1x32x256xf32> to vector<32x256xf32>
    %c0_i32_13 = arith.constant 0 : i32
    %20 = arith.cmpi eq, %arg1, %c0_i32_13 : i32
    %21 = arith.extui %20 : i1 to i32
    %c0_i32_14 = arith.constant 0 : i32
    %22 = arith.cmpi ne, %21, %c0_i32_14 : i32
    scf.if %22 {
      %36 = tpu.iota {dimensions = array<i32: 0>} : vector<8x256xi32>
      %37 = vector.broadcast %6 : vector<1x256xi32> to vector<8x256xi32>
      %38 = arith.cmpi eq, %37, %36 : vector<8x256xi32>
      %39 = vector.broadcast %13 : vector<1x256xi1> to vector<8x256xi1>
      %40 = arith.andi %38, %39 : vector<8x256xi1>
      %c0_i32_22 = arith.constant 0 : i32
      %41 = vector.broadcast %c0_i32_22 : i32 to vector<8x256xi32>
      %42 = arith.cmpi ne, %36, %41 : vector<8x256xi32>
      %43 = arith.andi %40, %42 : vector<8x256xi1>
      %44 = arith.extui %43 : vector<8x256xi1> to vector<8x256xi32>
      %45 = arith.sitofp %44 : vector<8x256xi32> to vector<8x256xf32>
      %46 = tpu.concatenate %17, %19 in 0 : vector<32x256xf32>, vector<32x256xf32> -> vector<64x256xf32>
      %c0_23 = arith.constant 0 : index
      %c0_24 = arith.constant 0 : index
      %47 = vector.load %arg8[%c0_23, %c0_24] : memref<8x64xf32, #tpu.memory_space<vmem>>, vector<8x64xf32>
      %cst_25 = arith.constant dense<0.000000e+00> : vector<8x64xf32>
      %48 = tpu.matmul %45, %46, %cst_25 {dimension_numbers = #tpu.dot_dimension_numbers<[1], [1], [0], [0], [0, 0, 1, 0], [], []>} : vector<8x256xf32>, vector<64x256xf32>, vector<8x64xf32> -> vector<8x64xf32>
      %49 = arith.addf %47, %48 : vector<8x64xf32>
      %c0_26 = arith.constant 0 : index
      %c0_27 = arith.constant 0 : index
      %50 = vector.load %arg8[%c0_26, %c0_27] : memref<8x64xf32, #tpu.memory_space<vmem>>, vector<8x64xf32>
      tpu.vector_store %arg8[%c0_26, %c0_27], %49 {strides = array<i32>} : memref<8x64xf32, #tpu.memory_space<vmem>>, vector<8x64xf32>,
      %c0_28 = arith.constant 0 : index
      %c0_29 = arith.constant 0 : index
      %51 = vector.load %arg9[%c0_28, %c0_29] : memref<8x1xf32, #tpu.memory_space<vmem>>, vector<8x1xf32>
      %cst_30 = arith.constant dense<0.000000e+00> : vector<8xf32>
      %52 = vector.multi_reduction <add>, %45, %cst_30 [1] : vector<8x256xf32> to vector<8xf32>
      %53 = vector.shape_cast %52 : vector<8xf32> to vector<8x1xf32>
      %54 = arith.addf %51, %53 : vector<8x1xf32>
      %c0_31 = arith.constant 0 : index
      %c0_32 = arith.constant 0 : index
      %55 = vector.load %arg9[%c0_31, %c0_32] : memref<8x1xf32, #tpu.memory_space<vmem>>, vector<8x1xf32>
      tpu.vector_store %arg9[%c0_31, %c0_32], %54 {strides = array<i32>} : memref<8x1xf32, #tpu.memory_space<vmem>>, vector<8x1xf32>,
      %c0_33 = arith.constant 0 : index
      %c0_34 = arith.constant 0 : index
      %56 = vector.load %arg11[%c0_33, %c0_34] : memref<1x1xf32, #tpu.memory_space<vmem>>, vector<1x1xf32>
      %57 = vector.shape_cast %15 : vector<1x256xf32> to vector<1x1x256xf32>
      %cst_35 = arith.constant dense<0.000000e+00> : vector<1xf32>
      %58 = vector.multi_reduction <add>, %57, %cst_35 [1, 2] : vector<1x1x256xf32> to vector<1xf32>
      %59 = vector.shape_cast %58 : vector<1xf32> to vector<1x1x1xf32>
      %60 = vector.extract %59[0, 0, 0] : f32 from vector<1x1x1xf32>
      %61 = vector.broadcast %60 : f32 to vector<1x1xf32>
      %62 = arith.addf %56, %61 : vector<1x1xf32>
      %c0_36 = arith.constant 0 : index
      %c0_37 = arith.constant 0 : index
      %63 = vector.load %arg11[%c0_36, %c0_37] : memref<1x1xf32, #tpu.memory_space<vmem>>, vector<1x1xf32>
      tpu.vector_store %arg11[%c0_36, %c0_37], %62 {strides = array<i32>} : memref<1x1xf32, #tpu.memory_space<vmem>>, vector<1x1xf32>,
    } else {
    }
    %c1_i32 = arith.constant 1 : i32
    %23 = arith.cmpi eq, %arg1, %c1_i32 : i32
    %c0_i32_15 = arith.constant 0 : i32
    %24 = arith.cmpi eq, %arg2, %c0_i32_15 : i32
    %25 = arith.andi %23, %24 : i1
    %26 = arith.extui %25 : i1 to i32
    %c0_i32_16 = arith.constant 0 : i32
    %27 = arith.cmpi ne, %26, %c0_i32_16 : i32
    scf.if %27 {
      %c0_22 = arith.constant 0 : index
      %c0_23 = arith.constant 0 : index
      %36 = vector.load %arg9[%c0_22, %c0_23] : memref<8x1xf32, #tpu.memory_space<vmem>>, vector<8x1xf32>
      %cst_24 = arith.constant 0.000000e+00 : f32
      %37 = vector.broadcast %cst_24 : f32 to vector<8x1xf32>
      %38 = arith.cmpf ogt, %36, %37 : vector<8x1xf32>
      %39 = arith.extui %38 : vector<8x1xi1> to vector<8x1xi32>
      %40 = arith.sitofp %39 : vector<8x1xi32> to vector<8x1xf32>
      %41 = vector.shape_cast %40 : vector<8x1xf32> to vector<1x8x1xf32>
      %cst_25 = arith.constant dense<0.000000e+00> : vector<1xf32>
      %42 = vector.multi_reduction <add>, %41, %cst_25 [1, 2] : vector<1x8x1xf32> to vector<1xf32>
      %43 = vector.shape_cast %42 : vector<1xf32> to vector<1x1x1xf32>
      %44 = vector.extract %43[0, 0, 0] : f32 from vector<1x1x1xf32>
      %45 = vector.broadcast %44 : f32 to vector<1x1xf32>
      %cst_26 = arith.constant 1.000000e+00 : f32
      %46 = vector.broadcast %cst_26 : f32 to vector<8x1xf32>
      %47 = arith.maximumf %36, %46 : vector<8x1xf32>
      %cst_27 = arith.constant 1.000000e+00 : f32
      %48 = vector.broadcast %cst_27 : f32 to vector<8x1xf32>
      %49 = arith.divf %48, %47 : vector<8x1xf32>
      %c0_28 = arith.constant 0 : index
      %c0_29 = arith.constant 0 : index
      %50 = vector.load %arg8[%c0_28, %c0_29] : memref<8x64xf32, #tpu.memory_space<vmem>>, vector<8x64xf32>
      %51 = vector.broadcast %49 : vector<8x1xf32> to vector<8x64xf32>
      %52 = arith.mulf %50, %51 : vector<8x64xf32>
      %53 = vector.extract_strided_slice %52 {offsets = [0, 0], sizes = [8, 32], strides = [1, 1]} : vector<8x64xf32> to vector<8x32xf32>
      %54 = vector.extract_strided_slice %52 {offsets = [0, 32], sizes = [8, 32], strides = [1, 1]} : vector<8x64xf32> to vector<8x32xf32>
      %cst_30 = arith.constant 1.000000e+00 : f32
      %55 = vector.broadcast %cst_30 : f32 to vector<8x32xf32>
      %56 = arith.mulf %53, %55 : vector<8x32xf32>
      %cst_31 = arith.constant dense<0xFF800000> : vector<8xf32>
      %57 = vector.multi_reduction <maximumf>, %56, %cst_31 [1] : vector<8x32xf32> to vector<8xf32>
      %58 = vector.shape_cast %57 : vector<8xf32> to vector<8x1xf32>
      %59 = vector.broadcast %58 : vector<8x1xf32> to vector<8x32xf32>
      %60 = arith.subf %56, %59 : vector<8x32xf32>
      %61 = math.exp %60 : vector<8x32xf32>
      %cst_32 = arith.constant dense<0.000000e+00> : vector<8xf32>
      %62 = vector.multi_reduction <add>, %61, %cst_32 [1] : vector<8x32xf32> to vector<8xf32>
      %63 = vector.shape_cast %62 : vector<8xf32> to vector<8x1xf32>
      %64 = math.log %63 : vector<8x1xf32>
      %65 = vector.broadcast %64 : vector<8x1xf32> to vector<8x32xf32>
      %66 = arith.subf %60, %65 : vector<8x32xf32>
      %cst_33 = arith.constant 1.000000e+00 : f32
      %67 = vector.broadcast %cst_33 : f32 to vector<8x32xf32>
      %68 = arith.mulf %54, %67 : vector<8x32xf32>
      %cst_34 = arith.constant dense<0xFF800000> : vector<8xf32>
      %69 = vector.multi_reduction <maximumf>, %68, %cst_34 [1] : vector<8x32xf32> to vector<8xf32>
      %70 = vector.shape_cast %69 : vector<8xf32> to vector<8x1xf32>
      %71 = vector.broadcast %70 : vector<8x1xf32> to vector<8x32xf32>
      %72 = arith.subf %68, %71 : vector<8x32xf32>
      %73 = math.exp %72 : vector<8x32xf32>
      %cst_35 = arith.constant dense<0.000000e+00> : vector<8xf32>
      %74 = vector.multi_reduction <add>, %73, %cst_35 [1] : vector<8x32xf32> to vector<8xf32>
      %75 = vector.shape_cast %74 : vector<8xf32> to vector<8x1xf32>
      %76 = math.log %75 : vector<8x1xf32>
      %77 = vector.broadcast %76 : vector<8x1xf32> to vector<8x32xf32>
      %78 = arith.subf %72, %77 : vector<8x32xf32>
      %79 = math.exp %66 : vector<8x32xf32>
      %80 = arith.subf %66, %78 : vector<8x32xf32>
      %81 = arith.mulf %79, %80 : vector<8x32xf32>
      %cst_36 = arith.constant dense<0.000000e+00> : vector<8xf32>
      %82 = vector.multi_reduction <add>, %81, %cst_36 [1] : vector<8x32xf32> to vector<8xf32>
      %83 = vector.shape_cast %82 : vector<8xf32> to vector<8x1xf32>
      %84 = arith.mulf %83, %40 : vector<8x1xf32>
      %85 = vector.shape_cast %84 : vector<8x1xf32> to vector<1x8x1xf32>
      %cst_37 = arith.constant dense<0.000000e+00> : vector<1xf32>
      %86 = vector.multi_reduction <add>, %85, %cst_37 [1, 2] : vector<1x8x1xf32> to vector<1xf32>
      %87 = vector.shape_cast %86 : vector<1xf32> to vector<1x1x1xf32>
      %88 = vector.extract %87[0, 0, 0] : f32 from vector<1x1x1xf32>
      %89 = vector.broadcast %88 : f32 to vector<1x1xf32>
      %cst_38 = arith.constant 1.000000e+00 : f32
      %90 = vector.broadcast %cst_38 : f32 to vector<1x1xf32>
      %91 = arith.mulf %90, %89 : vector<1x1xf32>
      %cst_39 = arith.constant 1.000000e+00 : f32
      %92 = vector.broadcast %cst_39 : f32 to vector<1x1xf32>
      %93 = arith.maximumf %45, %92 : vector<1x1xf32>
      %94 = arith.divf %91, %93 : vector<1x1xf32>
      %c0_40 = arith.constant 0 : index
      %c0_41 = arith.constant 0 : index
      %95 = vector.load %arg13[%c0_40, %c0_41] : memref<1x1xf32, #tpu.memory_space<vmem>>, vector<1x1xf32>
      tpu.vector_store %arg13[%c0_40, %c0_41], %94 {strides = array<i32>} : memref<1x1xf32, #tpu.memory_space<vmem>>, vector<1x1xf32>,
      %c0_42 = arith.constant 0 : index
      %c0_43 = arith.constant 0 : index
      %96 = vector.load %arg12[%c0_42, %c0_43] : memref<1x1xf32, #tpu.memory_space<vmem>>, vector<1x1xf32>
      tpu.vector_store %arg12[%c0_42, %c0_43], %45 {strides = array<i32>} : memref<1x1xf32, #tpu.memory_space<vmem>>, vector<1x1xf32>,
      %97 = arith.mulf %53, %53 : vector<8x32xf32>
      %cst_44 = arith.constant dense<0.000000e+00> : vector<8xf32>
      %98 = vector.multi_reduction <add>, %97, %cst_44 [1] : vector<8x32xf32> to vector<8xf32>
      %99 = vector.shape_cast %98 : vector<8xf32> to vector<8x1xf32>
      %cst_45 = arith.constant 1.000000e-16 : f32
      %100 = vector.broadcast %cst_45 : f32 to vector<8x1xf32>
      %101 = arith.maximumf %99, %100 : vector<8x1xf32>
      %102 = math.rsqrt %101 : vector<8x1xf32>
      %103 = vector.broadcast %102 : vector<8x1xf32> to vector<8x32xf32>
      %104 = arith.mulf %53, %103 : vector<8x32xf32>
      %105 = arith.mulf %54, %54 : vector<8x32xf32>
      %cst_46 = arith.constant dense<0.000000e+00> : vector<8xf32>
      %106 = vector.multi_reduction <add>, %105, %cst_46 [1] : vector<8x32xf32> to vector<8xf32>
      %107 = vector.shape_cast %106 : vector<8xf32> to vector<8x1xf32>
      %cst_47 = arith.constant 1.000000e-16 : f32
      %108 = vector.broadcast %cst_47 : f32 to vector<8x1xf32>
      %109 = arith.maximumf %107, %108 : vector<8x1xf32>
      %110 = math.rsqrt %109 : vector<8x1xf32>
      %111 = vector.broadcast %110 : vector<8x1xf32> to vector<8x32xf32>
      %112 = arith.mulf %54, %111 : vector<8x32xf32>
      %cst_48 = arith.constant 0.000000e+00 : f32
      %113 = vector.broadcast %cst_48 : f32 to vector<8x32xf32>
      %114 = arith.subf %113, %112 : vector<8x32xf32>
      %115 = tpu.concatenate %104, %114 in 1 : vector<8x32xf32>, vector<8x32xf32> -> vector<8x64xf32>
      %c0_49 = arith.constant 0 : index
      %c0_50 = arith.constant 0 : index
      %116 = vector.load %arg10[%c0_49, %c0_50] : memref<8x64xf32, #tpu.memory_space<vmem>>, vector<8x64xf32>
      tpu.vector_store %arg10[%c0_49, %c0_50], %115 {strides = array<i32>} : memref<8x64xf32, #tpu.memory_space<vmem>>, vector<8x64xf32>,
    } else {
    }
    %c1_i32_17 = arith.constant 1 : i32
    %28 = arith.cmpi eq, %arg1, %c1_i32_17 : i32
    %29 = arith.extui %28 : i1 to i32
    %c0_i32_18 = arith.constant 0 : i32
    %30 = arith.cmpi ne, %29, %c0_i32_18 : i32
    scf.if %30 {
      %36 = arith.mulf %17, %17 : vector<32x256xf32>
      %cst_22 = arith.constant dense<0.000000e+00> : vector<256xf32>
      %37 = vector.multi_reduction <add>, %36, %cst_22 [0] : vector<32x256xf32> to vector<256xf32>
      %38 = vector.shape_cast %37 : vector<256xf32> to vector<1x256xf32>
      %39 = arith.mulf %19, %19 : vector<32x256xf32>
      %cst_23 = arith.constant dense<0.000000e+00> : vector<256xf32>
      %40 = vector.multi_reduction <add>, %39, %cst_23 [0] : vector<32x256xf32> to vector<256xf32>
      %41 = vector.shape_cast %40 : vector<256xf32> to vector<1x256xf32>
      %cst_24 = arith.constant 1.000000e-16 : f32
      %42 = vector.broadcast %cst_24 : f32 to vector<1x256xf32>
      %43 = arith.maximumf %38, %42 : vector<1x256xf32>
      %44 = math.rsqrt %43 : vector<1x256xf32>
      %45 = arith.mulf %44, %15 : vector<1x256xf32>
      %46 = vector.broadcast %45 : vector<1x256xf32> to vector<32x256xf32>
      %47 = arith.mulf %17, %46 : vector<32x256xf32>
      %cst_25 = arith.constant 1.000000e-16 : f32
      %48 = vector.broadcast %cst_25 : f32 to vector<1x256xf32>
      %49 = arith.maximumf %41, %48 : vector<1x256xf32>
      %50 = math.rsqrt %49 : vector<1x256xf32>
      %51 = arith.mulf %50, %15 : vector<1x256xf32>
      %52 = vector.broadcast %51 : vector<1x256xf32> to vector<32x256xf32>
      %53 = arith.mulf %19, %52 : vector<32x256xf32>
      %54 = tpu.concatenate %47, %53 in 0 : vector<32x256xf32>, vector<32x256xf32> -> vector<64x256xf32>
      %c0_26 = arith.constant 0 : index
      %c0_27 = arith.constant 0 : index
      %55 = vector.load %arg10[%c0_26, %c0_27] : memref<8x64xf32, #tpu.memory_space<vmem>>, vector<8x64xf32>
      %cst_28 = arith.constant dense<0.000000e+00> : vector<8x256xf32>
      %56 = tpu.matmul %55, %54, %cst_28 {dimension_numbers = #tpu.dot_dimension_numbers<[1], [0], [0], [1], [0, 0, 1, 1], [], []>} : vector<8x64xf32>, vector<64x256xf32>, vector<8x256xf32> -> vector<8x256xf32>
      %c0_29 = arith.constant 0 : index
      %c0_30 = arith.constant 0 : index
      %57 = vector.load %arg14[%c0_29, %c0_30] : memref<1x1xf32, #tpu.memory_space<vmem>>, vector<1x1xf32>
      %58 = arith.mulf %56, %56 : vector<8x256xf32>
      %59 = vector.shape_cast %58 : vector<8x256xf32> to vector<1x8x256xf32>
      %cst_31 = arith.constant dense<0.000000e+00> : vector<1xf32>
      %60 = vector.multi_reduction <add>, %59, %cst_31 [1, 2] : vector<1x8x256xf32> to vector<1xf32>
      %61 = vector.shape_cast %60 : vector<1xf32> to vector<1x1x1xf32>
      %62 = vector.extract %61[0, 0, 0] : f32 from vector<1x1x1xf32>
      %63 = vector.broadcast %62 : f32 to vector<1x1xf32>
      %64 = arith.addf %57, %63 : vector<1x1xf32>
      %c0_32 = arith.constant 0 : index
      %c0_33 = arith.constant 0 : index
      %65 = vector.load %arg14[%c0_32, %c0_33] : memref<1x1xf32, #tpu.memory_space<vmem>>, vector<1x1xf32>
      tpu.vector_store %arg14[%c0_32, %c0_33], %64 {strides = array<i32>} : memref<1x1xf32, #tpu.memory_space<vmem>>, vector<1x1xf32>,
    } else {
    }
    %c1_i32_19 = arith.constant 1 : i32
    %31 = arith.cmpi eq, %arg1, %c1_i32_19 : i32
    %c0_i32_20 = arith.constant 0 : i32
    %32 = arith.cmpi eq, %arg2, %c0_i32_20 : i32
    %33 = arith.andi %31, %32 : i1
    %34 = arith.extui %33 : i1 to i32
    %c0_i32_21 = arith.constant 0 : i32
    %35 = arith.cmpi ne, %34, %c0_i32_21 : i32
    scf.if %35 {
      %c0_22 = arith.constant 0 : index
      %c0_23 = arith.constant 0 : index
      %36 = vector.load %arg11[%c0_22, %c0_23] : memref<1x1xf32, #tpu.memory_space<vmem>>, vector<1x1xf32>
      %c0_24 = arith.constant 0 : index
      %c0_25 = arith.constant 0 : index
      %37 = vector.load %arg12[%c0_24, %c0_25] : memref<1x1xf32, #tpu.memory_space<vmem>>, vector<1x1xf32>
      %38 = arith.mulf %36, %37 : vector<1x1xf32>
      %cst_26 = arith.constant 1.000000e+00 : f32
      %39 = vector.broadcast %cst_26 : f32 to vector<1x1xf32>
      %40 = arith.maximumf %38, %39 : vector<1x1xf32>
      %c0_27 = arith.constant 0 : index
      %c0_28 = arith.constant 0 : index
      %41 = vector.load %arg13[%c0_27, %c0_28] : memref<1x1xf32, #tpu.memory_space<vmem>>, vector<1x1xf32>
      %c0_29 = arith.constant 0 : index
      %c0_30 = arith.constant 0 : index
      %42 = vector.load %arg14[%c0_29, %c0_30] : memref<1x1xf32, #tpu.memory_space<vmem>>, vector<1x1xf32>
      %43 = arith.divf %42, %40 : vector<1x1xf32>
      %44 = arith.addf %41, %43 : vector<1x1xf32>
      %45 = vector.shape_cast %44 : vector<1x1xf32> to vector<1x1x1xf32>
      %46 = vector.shape_cast %45 : vector<1x1x1xf32> to vector<1x1x1xf32>
      %47 = vector.broadcast %46 : vector<1x1x1xf32> to vector<1x8x128xf32>
      %c0_31 = arith.constant 0 : index
      %c0_32 = arith.constant 0 : index
      %c0_33 = arith.constant 0 : index
      %48 = vector.load %arg7[%c0_31, %c0_32, %c0_33] : memref<1x8x128xf32, #tpu.memory_space<vmem>>, vector<1x8x128xf32>
      tpu.vector_store %arg7[%c0_31, %c0_32, %c0_33], %47 {strides = array<i32>} : memref<1x8x128xf32, #tpu.memory_space<vmem>>, vector<1x8x128xf32>,
    } else {
    }
    return
  }
  func.func @transform_0(%arg0: i32, %arg1: i32, %arg2: i32) -> (i32, i32, i32) {
    %c0_i32 = arith.constant 0 : i32
    %c0_i32_0 = arith.constant 0 : i32
    return %arg0, %c0_i32, %arg2 : i32, i32, i32
  }
  func.func @transform_1(%arg0: i32, %arg1: i32, %arg2: i32) -> (i32, i32, i32) {
    %c0_i32 = arith.constant 0 : i32
    %c0_i32_0 = arith.constant 0 : i32
    return %arg0, %c0_i32, %arg2 : i32, i32, i32
  }
  func.func @transform_2(%arg0: i32, %arg1: i32, %arg2: i32) -> (i32, i32, i32) {
    %c0_i32 = arith.constant 0 : i32
    %c0_i32_0 = arith.constant 0 : i32
    return %arg0, %c0_i32, %arg2 : i32, i32, i32
  }
  func.func @transform_3(%arg0: i32, %arg1: i32, %arg2: i32) -> (i32, i32, i32) {
    %c0_i32 = arith.constant 0 : i32
    %c0_i32_0 = arith.constant 0 : i32
    return %arg0, %c0_i32, %arg2 : i32, i32, i32
  }
  func.func @transform_4(%arg0: i32, %arg1: i32, %arg2: i32) -> (i32, i32, i32) {
    %c0_i32 = arith.constant 0 : i32
    %c0_i32_0 = arith.constant 0 : i32
    %c0_i32_1 = arith.constant 0 : i32
    return %arg0, %c0_i32, %c0_i32_0 : i32, i32, i32
  }
}

</mosaic_0001>

<llo_original>
// kernel: tpu_custom_call.1
$region0: #{tpu_custom_call.1}
  #allocation0 [shape = 'u32[]', space=smem, size = 0x4, offset = 0x4, fixed_abs, tag = 'smem constant byte address 0x4 - core index']
  #allocation1 [shape = 'u32[144,128]{1,0:T(1,128)}', space=vmem, size = 0x12000, scoped, tag = 'internal scratch']
  #allocation2 [shape = 'f32[8,64]{1,0:T(8,128)}', space=vmem, size = 0x1000, scoped, tag = 'scratch operand']
  #allocation3 [shape = 'f32[8,1]{1,0:T(8,128)}', space=vmem, size = 0x1000, scoped, tag = 'scratch operand']
  #allocation4 [shape = 'f32[8,64]{1,0:T(8,128)}', space=vmem, size = 0x1000, scoped, tag = 'scratch operand']
  #allocation5 [shape = 'f32[1,1]{1,0:T(1,128)}', space=vmem, size = 0x200, scoped, tag = 'scratch operand']
  #allocation6 [shape = 'f32[1,1]{1,0:T(1,128)}', space=vmem, size = 0x200, scoped, tag = 'scratch operand']
  #allocation7 [shape = 'f32[1,1]{1,0:T(1,128)}', space=vmem, size = 0x200, scoped, tag = 'scratch operand']
  #allocation8 [shape = 'f32[1,1]{1,0:T(1,128)}', space=vmem, size = 0x200, scoped, tag = 'scratch operand']
  %s0 = inlined_call_operand.hbm [shape: f32[2,32,256], index: 0, kind: input, shape index: {}]
  %s1 = inlined_call_operand.hbm [shape: f32[2,32,256], index: 1, kind: input, shape index: {}]
  %s2 = inlined_call_operand.vmem [shape: s32[2,1,256], index: 2, kind: input, shape index: {}]
  %s3 = inlined_call_operand.vmem [shape: f32[2,1,256], index: 3, kind: input, shape index: {}]
  %s4 = inlined_call_operand.hbm [shape: f32[2,8,128], index: 4, kind: output, shape index: {}]
  %s5 = sld [smem:[#allocation0]]
  $region77: #{tpu_custom_call.1} parent=0
    _
  %s7 = ssub.s32 1, %s5
  %s8 = scalar_select 0, %s7, %s5
  $region1: #{tpu_custom_call.1} parent=0
    #allocation9 [shape = 'u8[65536]{0}', space=vmem, size = 0x10000, scoped, tag = 'input window, operand 0']
    #allocation10 [shape = 's32[2]{0}', space=sflag, size = 0x8, scoped, tag = 'scoped memory for tpu_custom_call.1']
    #allocation11 [shape = 's32[2]{0}', space=sflag, size = 0x8, scoped, tag = 'scoped memory for tpu_custom_call.1']
    #allocation12 [shape = 'u8[65536]{0}', space=vmem, size = 0x10000, scoped, tag = 'input window, operand 1']
    #allocation13 [shape = 's32[2]{0}', space=sflag, size = 0x8, scoped, tag = 'scoped memory for tpu_custom_call.1']
    #allocation14 [shape = 'u8[8192]{0}', space=vmem, size = 0x2000, scoped, tag = 'output window, operand 0']
    %9 = vsyncpa [#allocation10], 0
    %s10 = scalar_lea.sflag [#allocation10], 1
    %11 = vsyncpa %s10, 0
    %12 = vsyncpa [#allocation13], 0
    %s13 = scalar_lea.sflag [#allocation13], 1
    %14 = vsyncpa %s13, 0
    %15 = vsyncpa [#allocation11], 0
    %s16 = scalar_lea.sflag [#allocation11], 1
    %17 = vsyncpa %s16, 0
    loop: start=0, step=1, limit=6
    $region2: #{tpu_custom_call.1} parent=1 // loop_pre_header
      _
    $region3: #{tpu_custom_call.1} parent=1 // loop_header
      %s19 = sphi 0, %s23
      %p20 = scmp.ge.s32.totalorder %s19, 6
      %s26 = sphi 0, %s45
      %s27 = sphi 0, %s41
      %s28 = sphi 0, %s37
      %s29 = sphi 0, %s26
      %s30 = sphi 0, %s27
      %s31 = sphi 0, %s28
      %s32 = sphi 0, %s29
      %s33 = sphi 0, %s30
      %s34 = sphi 0, %s31
      %s50 = sphi 0, %s52
      %s53 = sphi 0, %s50
      %s54 = sphi 0, %s53
      %s70 = sphi 0, %s54
      %s78 = sphi 0, %s80
      %s81 = sphi 0, %s78
      %s82 = sphi 0, %s81
      %s98 = sphi 0, %s82
      %s106 = sphi 0, %s108
      %s109 = sphi 0, %s106
      %s110 = sphi 0, %s109
      %s126 = sphi 0, %s110
      %s134 = sphi 0, %s136
      %s137 = sphi 0, %s134
      %s138 = sphi 0, %s137
      %s154 = sphi 0, %s138
      %s160 = sphi 0, %s162
      %s163 = sphi 0, %s160
      %s164 = sphi 0, %s163
      %s180 = sphi 0, %s164
    $region4: #{tpu_custom_call.1} parent=1 // loop_header_branch
      %22 = sbr.rel (%p20) target = $region8
    $region5: #{tpu_custom_call.1} parent=1 // loop_body
      %s24 = ssub.s32 %s19, 1
      %s25 = ssub.s32 %s19, 2
      %s35 = sadd.s32 1, %s28
      %p36 = scmp.ge.s32.totalorder %s35, 1
      %s37 = scalar_select %p36, 0, %s35
      %s38 = sadd.s32 1, %s27
      %s39 = scalar_select %p36, %s38, %s27
      %p40 = scmp.ge.s32.totalorder %s39, 2
      %s41 = scalar_select %p40, 0, %s39
      %s42 = sadd.s32 1, %s26
      %s43 = scalar_select %p40, %s42, %s26
      %p44 = scmp.ge.s32.totalorder %s43, 2
      %s45 = scalar_select %p44, 0, %s43
      %s46 = ssub.s32 %s26, %s45
      %s47 = ssub.s32 %s28, %s37
      %s48 = sor.u32 %s46, %s47
      %p49 = scmp.eq.s32.totalorder %s48, 0
      %s51 = sadd.s32 %s50, 1
      %s52 = scalar_select %p49, %s50, %s51
      %p55 = pneg %p49
      %p56 = scmp.eq.s32.totalorder %s19, 3
      %p57 = por %p55, %p56
      %p58 = scmp.ne.s32.totalorder %s50, %s53
      %p59 = scmp.eq.s32.totalorder %s19, 0
      %p60 = por %p58, %p59
      %p61 = scmp.ne.s32.totalorder %s50, %s53
      %p62 = scmp.eq.s32.totalorder %s24, 3
      %p63 = por %p61, %p62
      %p64 = scmp.ne.s32.totalorder %s53, %s54
      %p65 = scmp.eq.s32.totalorder %s24, 0
      %p66 = por %p64, %p65
      %p67 = scmp.ne.s32.totalorder %s53, %s54
      %p68 = scmp.eq.s32.totalorder %s25, 3
      %p69 = por %p67, %p68
      %p71 = scmp.ne.s32.totalorder %s54, %s70
      %p72 = scmp.eq.s32.totalorder %s25, 0
      %p73 = por %p71, %p72
      %s74 = ssub.s32 %s26, %s45
      %s75 = ssub.s32 %s28, %s37
      %s76 = sor.u32 %s74, %s75
      %p77 = scmp.eq.s32.totalorder %s76, 0
      %s79 = sadd.s32 %s78, 1
      %s80 = scalar_select %p77, %s78, %s79
      %p83 = pneg %p77
      %p84 = scmp.eq.s32.totalorder %s19, 3
      %p85 = por %p83, %p84
      %p86 = scmp.ne.s32.totalorder %s78, %s81
      %p87 = scmp.eq.s32.totalorder %s19, 0
      %p88 = por %p86, %p87
      %p89 = scmp.ne.s32.totalorder %s78, %s81
      %p90 = scmp.eq.s32.totalorder %s24, 3
      %p91 = por %p89, %p90
      %p92 = scmp.ne.s32.totalorder %s81, %s82
      %p93 = scmp.eq.s32.totalorder %s24, 0
      %p94 = por %p92, %p93
      %p95 = scmp.ne.s32.totalorder %s81, %s82
      %p96 = scmp.eq.s32.totalorder %s25, 3
      %p97 = por %p95, %p96
      %p99 = scmp.ne.s32.totalorder %s82, %s98
      %p100 = scmp.eq.s32.totalorder %s25, 0
      %p101 = por %p99, %p100
      %s102 = ssub.s32 %s26, %s45
      %s103 = ssub.s32 %s28, %s37
      %s104 = sor.u32 %s102, %s103
      %p105 = scmp.eq.s32.totalorder %s104, 0
      %s107 = sadd.s32 %s106, 1
      %s108 = scalar_select %p105, %s106, %s107
      %p111 = pneg %p105
      %p112 = scmp.eq.s32.totalorder %s19, 3
      %p113 = por %p111, %p112
      %p114 = scmp.ne.s32.totalorder %s106, %s109
      %p115 = scmp.eq.s32.totalorder %s19, 0
      %p116 = por %p114, %p115
      %p117 = scmp.ne.s32.totalorder %s106, %s109
      %p118 = scmp.eq.s32.totalorder %s24, 3
      %p119 = por %p117, %p118
      %p120 = scmp.ne.s32.totalorder %s109, %s110
      %p121 = scmp.eq.s32.totalorder %s24, 0
      %p122 = por %p120, %p121
      %p123 = scmp.ne.s32.totalorder %s109, %s110
      %p124 = scmp.eq.s32.totalorder %s25, 3
      %p125 = por %p123, %p124
      %p127 = scmp.ne.s32.totalorder %s110, %s126
      %p128 = scmp.eq.s32.totalorder %s25, 0
      %p129 = por %p127, %p128
      %s130 = ssub.s32 %s26, %s45
      %s131 = ssub.s32 %s28, %s37
      %s132 = sor.u32 %s130, %s131
      %p133 = scmp.eq.s32.totalorder %s132, 0
      %s135 = sadd.s32 %s134, 1
      %s136 = scalar_select %p133, %s134, %s135
      %p139 = pneg %p133
      %p140 = scmp.eq.s32.totalorder %s19, 3
      %p141 = por %p139, %p140
      %p142 = scmp.ne.s32.totalorder %s134, %s137
      %p143 = scmp.eq.s32.totalorder %s19, 0
      %p144 = por %p142, %p143
      %p145 = scmp.ne.s32.totalorder %s134, %s137
      %p146 = scmp.eq.s32.totalorder %s24, 3
      %p147 = por %p145, %p146
      %p148 = scmp.ne.s32.totalorder %s137, %s138
      %p149 = scmp.eq.s32.totalorder %s24, 0
      %p150 = por %p148, %p149
      %p151 = scmp.ne.s32.totalorder %s137, %s138
      %p152 = scmp.eq.s32.totalorder %s25, 3
      %p153 = por %p151, %p152
      %p155 = scmp.ne.s32.totalorder %s138, %s154
      %p156 = scmp.eq.s32.totalorder %s25, 0
      %p157 = por %p155, %p156
      %s158 = ssub.s32 %s26, %s45
      %p159 = scmp.eq.s32.totalorder %s158, 0
      %s161 = sadd.s32 %s160, 1
      %s162 = scalar_select %p159, %s160, %s161
      %p165 = pneg %p159
      %p166 = scmp.eq.s32.totalorder %s19, 3
      %p167 = por %p165, %p166
      %p168 = scmp.ne.s32.totalorder %s160, %s163
      %p169 = scmp.eq.s32.totalorder %s19, 0
      %p170 = por %p168, %p169
      %p171 = scmp.ne.s32.totalorder %s160, %s163
      %p172 = scmp.eq.s32.totalorder %s24, 3
      %p173 = por %p171, %p172
      %p174 = scmp.ne.s32.totalorder %s163, %s164
      %p175 = scmp.eq.s32.totalorder %s24, 0
      %p176 = por %p174, %p175
      %p177 = scmp.ne.s32.totalorder %s163, %s164
      %p178 = scmp.eq.s32.totalorder %s25, 3
      %p179 = por %p177, %p178
      %p181 = scmp.ne.s32.totalorder %s164, %s180
      %p182 = scmp.eq.s32.totalorder %s25, 0
      %p183 = por %p181, %p182
      %p184 = scmp.le.s32.totalorder 1, %s19
      %p185 = scmp.lt.s32.totalorder %s19, 5
      %p186 = pnand %p184, %p185
      %p187 = pneg %p186
      // Predicated region
      $region9: #{tpu_custom_call.1} parent=5 // pred_check
        _
      $region10: #{tpu_custom_call.1} parent=5 // pred_check_branch
        %189 = sbr.rel (%p186) target = $region12
      $region11: #{tpu_custom_call.1} parent=5 // pred_region
        %s190 = ssub.s32 %s19, 1
      $region12: #{tpu_custom_call.1} parent=5 // pred_fallthru
        _
      %p191 = scmp.lt.s32.totalorder %s19, 4
      // Predicated region
      $region13: #{tpu_custom_call.1} parent=5 // pred_check
        %p192 = pneg %p191
      $region14: #{tpu_custom_call.1} parent=5 // pred_check_branch
        %194 = sbr.rel (%p192) target = $region16
      $region15: #{tpu_custom_call.1} parent=5 // pred_region
        // Predicated region
        $region17: #{tpu_custom_call.1} parent=15 // pred_check
          %p195 = pneg %p60
        $region18: #{tpu_custom_call.1} parent=15 // pred_check_branch
          %197 = sbr.rel (%p195) target = $region20
        $region19: #{tpu_custom_call.1} parent=15 // pred_region
          %s198 = sand.u32 %s50, 1
          %s199 = scalar_lea.sflag [#allocation10], %s198
          %s200 = sand.u32 %s50, 1
          %s201 = smul.addr %s200, 64
          %s202 = scalar_lea.vmem [#allocation9], %s201
          %s203 = smul.u32 2, %s28
          %s205 = ssub.s32 1024, 1024
          %206 = vsyncadd %s199, %s205
          %s207 = smul.addr %s26, 8
          %s208 = sadd.s32 %s203, %s207
          %s209 = smul.addr %s208, 128
          %s210 = scalar_lea.hbm %s0, %s209
          %s211 = sshll.u32 %s202, 4
          %s212 = int_to_ptr.vmem [resolvable:$true] %s211
          %217 = dma.hbm_to_vmem [thread:$0]  %s210, 1024, %s212, %s199, 256, 256, 16
        $region20: #{tpu_custom_call.1} parent=15 // pred_fallthru
          _
        // Predicated region
        $region21: #{tpu_custom_call.1} parent=15 // pred_check
          %p218 = pneg %p88
        $region22: #{tpu_custom_call.1} parent=15 // pred_check_branch
          %220 = sbr.rel (%p218) target = $region24
        $region23: #{tpu_custom_call.1} parent=15 // pred_region
          %s221 = sand.u32 %s78, 1
          %s222 = scalar_lea.sflag [#allocation13], %s221
          %s223 = sand.u32 %s78, 1
          %s224 = smul.addr %s223, 64
          %s225 = scalar_lea.vmem [#allocation12], %s224
          %s226 = smul.u32 2, %s28
          %s228 = ssub.s32 1024, 1024
          %229 = vsyncadd %s222, %s228
          %s230 = smul.addr %s26, 8
          %s231 = sadd.s32 %s226, %s230
          %s232 = smul.addr %s231, 128
          %s233 = scalar_lea.hbm %s1, %s232
          %s234 = sshll.u32 %s225, 4
          %s235 = int_to_ptr.vmem [resolvable:$true] %s234
          %240 = dma.hbm_to_vmem [thread:$0]  %s233, 1024, %s235, %s222, 256, 256, 16
        $region24: #{tpu_custom_call.1} parent=15 // pred_fallthru
          _
        // Predicated region
        $region25: #{tpu_custom_call.1} parent=15 // pred_check
          %p241 = pneg %p116
        $region26: #{tpu_custom_call.1} parent=15 // pred_check_branch
          %243 = sbr.rel (%p241) target = $region28
        $region27: #{tpu_custom_call.1} parent=15 // pred_region
          %s244 = smul.u32 2, %s28
          %p245 = scmp.lt.s32.totalorder %s26, 1
          %s246 = scalar_select %p245, %s26, 1
          %p247 = scmp.lt.s32.totalorder %s244, 1
          %s248 = scalar_select %p247, %s244, 1
          %s249 = smul.addr %s246, 2
          %s250 = sadd.s32 %s248, %s249
          %s251 = scalar_lea.vmem %s2, %s250
          %s252 = smul.u32 2, %s28
        $region28: #{tpu_custom_call.1} parent=15 // pred_fallthru
          _
        // Predicated region
        $region29: #{tpu_custom_call.1} parent=15 // pred_check
          %p253 = pneg %p144
        $region30: #{tpu_custom_call.1} parent=15 // pred_check_branch
          %255 = sbr.rel (%p253) target = $region32
        $region31: #{tpu_custom_call.1} parent=15 // pred_region
          %s256 = smul.u32 2, %s28
          %p257 = scmp.lt.s32.totalorder %s26, 1
          %s258 = scalar_select %p257, %s26, 1
          %p259 = scmp.lt.s32.totalorder %s256, 1
          %s260 = scalar_select %p259, %s256, 1
          %s261 = smul.addr %s258, 2
          %s262 = sadd.s32 %s260, %s261
          %s263 = scalar_lea.vmem %s3, %s262
          %s264 = smul.u32 2, %s28
        $region32: #{tpu_custom_call.1} parent=15 // pred_fallthru
          _
      $region16: #{tpu_custom_call.1} parent=5 // pred_fallthru
        _
      %p265 = scmp.le.s32.totalorder 1, %s19
      %p266 = scmp.lt.s32.totalorder %s19, 5
      %p267 = pnand %p265, %p266
      %p268 = pneg %p267
      // Predicated region
      $region33: #{tpu_custom_call.1} parent=5 // pred_check
        _
      $region34: #{tpu_custom_call.1} parent=5 // pred_check_branch
        %270 = sbr.rel (%p267) target = $region36
      $region35: #{tpu_custom_call.1} parent=5 // pred_region
        %s271 = ssub.s32 %s19, 1
        %s272 = sand.u32 %s53, 1
        %s273 = scalar_lea.sflag [#allocation10], %s272
        %s274 = sand.u32 %s53, 1
        %s275 = smul.addr %s274, 64
        %s276 = scalar_lea.vmem [#allocation9], %s275
        // Predicated region
        $region37: #{tpu_custom_call.1} parent=35 // pred_check
          %p277 = pneg %p66
        $region38: #{tpu_custom_call.1} parent=35 // pred_check_branch
          %279 = sbr.rel (%p277) target = $region40
        $region39: #{tpu_custom_call.1} parent=35 // pred_region
          %280 = dma.done %s273, 1024
        $region40: #{tpu_custom_call.1} parent=35 // pred_fallthru
          _
        %s281 = sand.u32 %s81, 1
        %s282 = scalar_lea.sflag [#allocation13], %s281
        %s283 = sand.u32 %s81, 1
        %s284 = smul.addr %s283, 64
        %s285 = scalar_lea.vmem [#allocation12], %s284
        // Predicated region
        $region41: #{tpu_custom_call.1} parent=35 // pred_check
          %p286 = pneg %p94
        $region42: #{tpu_custom_call.1} parent=35 // pred_check_branch
          %288 = sbr.rel (%p286) target = $region44
        $region43: #{tpu_custom_call.1} parent=35 // pred_region
          %289 = dma.done %s282, 1024
        $region44: #{tpu_custom_call.1} parent=35 // pred_fallthru
          _
        %s290 = sand.u32 %s53, 1
        %s291 = scalar_lea.sflag [#allocation10], %s290
        %s292 = sand.u32 %s53, 1
        %s293 = smul.addr %s292, 64
        %s294 = scalar_lea.vmem [#allocation9], %s293
        %p295 = pneg %p66
        %p296 = pneg %p63
        %s297 = sand.u32 %s81, 1
        %s298 = scalar_lea.sflag [#allocation13], %s297
        %s299 = sand.u32 %s81, 1
        %s300 = smul.addr %s299, 64
        %s301 = scalar_lea.vmem [#allocation12], %s300
        %p302 = pneg %p94
        %p303 = pneg %p91
        %s304 = smul.u32 2, %s31
        %p305 = scmp.lt.s32.totalorder %s29, 1
        %s306 = scalar_select %p305, %s29, 1
        %p307 = scmp.lt.s32.totalorder %s304, 1
        %s308 = scalar_select %p307, %s304, 1
        %s309 = smul.addr %s306, 2
        %s310 = sadd.s32 %s308, %s309
        %s311 = scalar_lea.vmem %s2, %s310
        %p312 = pneg %p122
        %p313 = pneg %p119
        %s314 = smul.u32 2, %s31
        %p315 = scmp.lt.s32.totalorder %s29, 1
        %s316 = scalar_select %p315, %s29, 1
        %p317 = scmp.lt.s32.totalorder %s314, 1
        %s318 = scalar_select %p317, %s314, 1
        %s319 = smul.addr %s316, 2
        %s320 = sadd.s32 %s318, %s319
        %s321 = scalar_lea.vmem %s3, %s320
        %p322 = pneg %p150
        %p323 = pneg %p147
        %p324 = pneg %p176
        %p325 = pneg %p173
        %s326 = sand.u32 %s163, 1
        %s327 = scalar_lea.sflag [#allocation11], %s326
        %s328 = sand.u32 %s163, 1
        %s329 = smul.addr %s328, 8
        %s330 = scalar_lea.vmem [#allocation14], %s329
        %s331 = smul.u32 2, %s31
        %s332 = smul.u32 2, %s31
        %s333 = smul.u32 2, %s31
        %p334 = scmp.lt.s32.totalorder %s29, 1
        %s335 = scalar_select %p334, %s29, 1
        %p336 = scmp.lt.s32.totalorder %s333, 1
        %s337 = scalar_select %p336, %s333, 1
        %s338 = smul.addr %s335, 2
        %s339 = sadd.s32 %s337, %s338
        %s340 = scalar_lea.vmem %s2, %s339
        %s341 = smul.u32 2, %s31
        %s342 = smul.u32 2, %s31
        %p343 = scmp.lt.s32.totalorder %s29, 1
        %s344 = scalar_select %p343, %s29, 1
        %p345 = scmp.lt.s32.totalorder %s342, 1
        %s346 = scalar_select %p345, %s342, 1
        %s347 = smul.addr %s344, 2
        %s348 = sadd.s32 %s346, %s347
        %s349 = scalar_lea.vmem %s3, %s348
        %s350 = smul.u32 2, %s31
        %p351 = scmp.eq.s32.totalorder %s30, 0
        %p352 = scmp.eq.s32.totalorder %s31, 0
        %p353 = pnand %p351, %p352
        %p354 = pneg %p353
        // Predicated region
        $region45: #{tpu_custom_call.1} parent=35 // pred_check
          _
        $region46: #{tpu_custom_call.1} parent=35 // pred_check_branch
          %356 = sbr.rel (%p353) target = $region48
        $region47: #{tpu_custom_call.1} parent=35 // pred_region
          %vm357 = vcmask 523264
          %358 = vst.msk [vmem:[#allocation2] sm:$0xff] %vm357, 0.0
          %vm359 = vcmask 7168
          %360 = vst.msk [vmem:[#allocation3] sm:$0xff] %vm359, 0.0
          %vm361 = vcmask 0
          %362 = vst.msk [vmem:[#allocation5] sm:$0x1] %vm361, 0.0
          %363 = vst.msk [vmem:[#allocation8] sm:$0x1] %vm361, 0.0
        $region48: #{tpu_custom_call.1} parent=35 // pred_fallthru
          _
        %v364 = vld [vmem:[%s340] sm:$0x3]
        %v365 = vld [vmem:[%s349] sm:$0x3]
        %vm366 = vcmp.gt.f32.partialorder %v365, 0.0
        %vm367 = vcmp.ne.s32.totalorder %v364, 255
        %vm368 = vmand %vm366, %vm367
        %v369 = vsel %vm368, 1, 0
        %v370 = vcvt.s32.f32 %v369
        %v371 = vld [vmem:[%s285] sm:$0xff]
        %v372 = vld [vmem:[%s285 + $0x8] sm:$0xff]
        %v373 = vld [vmem:[%s285 + $0x10] sm:$0xff]
        %v374 = vld [vmem:[%s285 + $0x18] sm:$0xff]
        %v375 = vld [vmem:[%s285 + $0x20] sm:$0xff]
        %v376 = vld [vmem:[%s285 + $0x28] sm:$0xff]
        %v377 = vld [vmem:[%s285 + $0x30] sm:$0xff]
        %v378 = vld [vmem:[%s285 + $0x38] sm:$0xff]
        %v379 = vld [vmem:[%s276] sm:$0xff]
        %v380 = vld [vmem:[%s276 + $0x8] sm:$0xff]
        %v381 = vld [vmem:[%s276 + $0x10] sm:$0xff]
        %v382 = vld [vmem:[%s276 + $0x18] sm:$0xff]
        %v383 = vld [vmem:[%s276 + $0x20] sm:$0xff]
        %v384 = vld [vmem:[%s276 + $0x28] sm:$0xff]
        %v385 = vld [vmem:[%s276 + $0x30] sm:$0xff]
        %v386 = vld [vmem:[%s276 + $0x38] sm:$0xff]
        // Predicated region
        $region49: #{tpu_custom_call.1} parent=35 // pred_check
          %p387 = pneg %p351
        $region50: #{tpu_custom_call.1} parent=35 // pred_check_branch
          %389 = sbr.rel (%p387) target = $region52
        $region51: #{tpu_custom_call.1} parent=35 // pred_region
          %v390 = vlaneseq
          %v391 = vshrl.u32 %v390, 7
          %v392 = vlaneseq
          %v393 = vshrl.u32 %v392, 7
          %v394 = vsub.s32 0, %v393
          %v395 = vrot.slane %v364, %v394
          %v396 = vlaneseq
          %v397 = vshrl.u32 %v396, 7
          %v398 = vsub.s32 1, %v397
          %v399 = vrot.slane %v364, %v398
          %vm400 = vcmp.eq.s32.totalorder %v395, %v391
          %vm401 = vcmp.eq.s32.totalorder %v399, %v391
          %v402 = vlaneseq
          %v403 = vshrl.u32 %v402, 7
          %v404 = vsub.s32 0, %v403
          %v405 = vrot.slane %v369, %v404
          %v406 = vlaneseq
          %v407 = vshrl.u32 %v406, 7
          %v408 = vsub.s32 1, %v407
          %v409 = vrot.slane %v369, %v408
          %vm410 = vcmp.eq.s32.totalorder %v405, 1
          %vm411 = vcmp.eq.s32.totalorder %v409, 1
          %vm412 = vmand %vm400, %vm410
          %vm413 = vmand %vm401, %vm411
          %vm414 = vcmp.ne.s32.totalorder %v391, 0
          %vm415 = vmand %vm412, %vm414
          %vm416 = vmand %vm413, %vm414
          %v417 = vsel %vm415, 1, 0
          %v418 = vsel %vm416, 1, 0
          %v419 = vcvt.s32.f32 %v417
          %v420 = vcvt.s32.f32 %v418
          %v421 = vld [vmem:[#allocation2] sm:$0xff]
          %422 = vmatprep.subr.mxu0 %v372
          %423 = vmatpush1.xpose.msra.mxu0 %v371
          %424 = vmatprep.subr.mxu0 %v374
          %425 = vmatpush1.xpose.msra.mxu0 %v373
          %426 = vmatprep.subr.mxu0 %v376
          %427 = vmatpush1.xpose.msra.mxu0 %v375
          %428 = vmatprep.subr.mxu0 %v378
          %429 = vmatpush1.xpose.msra.mxu0 %v377
          %430 = vmatprep.subr.mxu0 %v380
          %431 = vmatpush1.xpose.msra.mxu0 %v379
          %432 = vmatprep.subr.mxu0 %v382
          %433 = vmatpush1.xpose.msra.mxu0 %v381
          %434 = vmatprep.subr.mxu0 %v384
          %435 = vmatpush1.xpose.msra.mxu0 %v383
          %436 = vmatprep.subr.mxu0 %v386
          %437 = vmatpush1.xpose.msra.mxu0 %v385
          %438 = vmatprep.subr.mxu0 0.0
          %439 = vmatpush1.xpose.msra.mxu0 0.0
          %440 = vmatprep.subr.mxu0 0.0
          %441 = vmatpush1.xpose.msra.mxu0 0.0
          %442 = vmatprep.subr.mxu0 0.0
          %443 = vmatpush1.xpose.msra.mxu0 0.0
          %444 = vmatprep.subr.mxu0 0.0
          %445 = vmatpush1.xpose.msra.mxu0 0.0
          %446 = vmatprep.subr.mxu0 0.0
          %447 = vmatpush1.xpose.msra.mxu0 0.0
          %448 = vmatprep.subr.mxu0 0.0
          %449 = vmatpush1.xpose.msra.mxu0 0.0
          %450 = vmatprep.subr.mxu0 0.0
          %451 = vmatpush1.xpose.msra.mxu0 0.0
          %452 = vmatprep.subr.mxu0 0.0
          %453 = vmatpush1.xpose.msra.mxu0 0.0
          %454 = vmatprep.subr.mxu0 0.0
          %455 = vmatpush1.xpose.msra.mxu0 0.0
          %456 = vmatprep.subr.mxu0 0.0
          %457 = vmatpush1.xpose.msra.mxu0 0.0
          %458 = vmatprep.subr.mxu0 0.0
          %459 = vmatpush1.xpose.msra.mxu0 0.0
          %460 = vmatprep.subr.mxu0 0.0
          %461 = vmatpush1.xpose.msra.mxu0 0.0
          %462 = vmatprep.subr.mxu0 0.0
          %463 = vmatpush1.xpose.msra.mxu0 0.0
          %464 = vmatprep.subr.mxu0 0.0
          %465 = vmatpush1.xpose.msra.mxu0 0.0
          %466 = vmatprep.subr.mxu0 0.0
          %467 = vmatpush1.xpose.msra.mxu0 0.0
          %468 = vmatprep.subr.mxu0 0.0
          %469 = vmatpush1.xpose.msra.mxu0 0.0
          %470 = vmatprep.subr.mxu0 0.0
          %471 = vmatpush1.xpose.msra.mxu0 0.0
          %472 = vmatprep.subr.mxu0 0.0
          %473 = vmatpush1.xpose.msra.mxu0 0.0
          %474 = vmatprep.subr.mxu0 0.0
          %475 = vmatpush1.xpose.msra.mxu0 0.0
          %476 = vmatprep.subr.mxu0 0.0
          %477 = vmatpush1.xpose.msra.mxu0 0.0
          %478 = vmatprep.subr.mxu0 0.0
          %479 = vmatpush1.xpose.msra.mxu0 0.0
          %480 = vmatprep.subr.mxu0 0.0
          %481 = vmatpush1.xpose.msra.mxu0 0.0
          %482 = vmatprep.subr.mxu0 0.0
          %483 = vmatpush1.xpose.msra.mxu0 0.0
          %484 = vmatprep.subr.mxu0 0.0
          %485 = vmatpush1.xpose.msra.mxu0 0.0
          %486 = vmatprep.mubr.f32.mxu0 %v420
          %487 = vmatmul.mubr.f32.gmra.mrb[0].mxu0 %v419
          %v488 = vpop.f32.mrb[0].mxu0
          %v489 = vadd.f32 0.0, %v488
          %v490 = vpop.f32.mrb[0].mxu0
          %491 = vdwg.mxu0
          %v492 = vadd.f32 %v421, %v489
          %vm493 = vcmask 523264
          %494 = vst.msk [vmem:[#allocation2] sm:$0xff] %vm493, %v492
          %v495 = vld [vmem:[#allocation3] sm:$0xff]
          %v496 = vadd.f32 %v419, %v420
          %497 = vadd.xlane.f32.xlu0 %v496
          %v498 = vpop.xlane.xlu0 %497
          %v499 = vadd.f32 %v495, %v498
          %vm500 = vcmask 7168
          %501 = vst.msk [vmem:[#allocation3] sm:$0xff] %vm500, %v499
          %v502 = vld [vmem:[#allocation5] sm:$0x1]
          %v504 = vlaneseq
          %v505 = vshrl.u32 %v504, 7
          %v506 = vsub.s32 0, %v505
          %v507 = vrot.slane %v370, %v506
          %v508 = vlaneseq
          %v509 = vshrl.u32 %v508, 7
          %v510 = vsub.s32 1, %v509
          %v511 = vrot.slane %v370, %v510
          %vm514 = vcmask 1040384
          %v515 = vsel %vm514, %v507, 0.0
          %v516 = vsel %vm514, %v511, 0.0
          %v517 = vadd.f32 %v515, %v516
          %518 = vadd.xlane.f32.xlu0 %v517
          %v519 = vpop.xlane.xlu0 %518
          %v520 = vrot.slane %v519, 4
          %v521 = vadd.f32 %v519, %v520
          %v522 = vrot.slane %v521, 2
          %v523 = vadd.f32 %v521, %v522
          %v524 = vrot.slane %v523, 1
          %v525 = vadd.f32 %v523, %v524
          %s526 = vtos %v525
          %v527 = vstv %s526
          %v528 = vadd.f32 %v502, %v527
          %vm529 = vcmask 0
          %530 = vst.msk [vmem:[#allocation5] sm:$0x1] %vm529, %v528
        $region52: #{tpu_custom_call.1} parent=35 // pred_fallthru
          _
        %p531 = scmp.eq.s32.totalorder %s30, 1
        %p532 = pnand %p531, %p352
        %p533 = pneg %p532
        // Predicated region
        $region53: #{tpu_custom_call.1} parent=35 // pred_check
          _
        $region54: #{tpu_custom_call.1} parent=35 // pred_check_branch
          %535 = sbr.rel (%p532) target = $region56
        $region55: #{tpu_custom_call.1} parent=35 // pred_region
          %v536 = vld [vmem:[#allocation3] sm:$0xff]
          %vm537 = vcmp.gt.f32.partialorder %v536, 0.0
          %v538 = vsel %vm537, 1, 0
          %v539 = vcvt.s32.f32 %v538
          %vm540 = vcmask 7168
          %v541 = vsel %vm540, %v539, 0.0
          %542 = vadd.xlane.f32.xlu0 %v541
          %v543 = vpop.xlane.xlu0 %542
          %v544 = vrot.slane %v543, 4
          %v545 = vadd.f32 %v543, %v544
          %v546 = vrot.slane %v545, 2
          %v547 = vadd.f32 %v545, %v546
          %v548 = vrot.slane %v547, 1
          %v549 = vadd.f32 %v547, %v548
          %s550 = vtos %v549
          %v551 = vstv %s550
          %v552 = vmax.f32 %v536, 1.0
          %v553 = vrcp.pop %v552
          %v554 = vmul.f32 1.0, %v553
          %v555 = vld [vmem:[#allocation2] sm:$0xff]
          %557 = vset.pattern.permute.xlu0 0
          %558 = vperm.xlu0 %557, %v554
          %v559 = vpop.permute.xlu0 %558
          %v561 = vmul.f32 %v555, %v559
          %vm562 = vcmask 261120
          %v563 = vsel %vm562, %v561, -inf
          %564 = vmax.xlane.f32.xlu0 %v563
          %v565 = vpop.xlane.xlu0 %564
          %v566 = vsub.f32 %v561, %v565
          %v567 = vmul.f32 %v566, 1.442695
          %v568 = vpow.pop %v567
          %v569 = vsel %vm562, %v568, 0.0
          %570 = vadd.xlane.f32.xlu0 %v569
          %v571 = vpop.xlane.xlu0 %570
          %v572 = vlog2.pop %v571
          %v573 = vmul.f32 %v572, 0.6931472
          %v574 = vsub.f32 %v566, %v573
          %vm575 = vcmask 523520
          %v576 = vsel %vm575, %v561, -inf
          %577 = vmax.xlane.f32.xlu0 %v576
          %v578 = vpop.xlane.xlu0 %577
          %v579 = vsub.f32 %v561, %v578
          %v580 = vmul.f32 %v579, 1.442695
          %v581 = vpow.pop %v580
          %583 = vrot.lane.b32.xlu0 %v581, 96
          %v584 = vpop.permute.xlu0 %583
          %v586 = vsel %vm562, %v584, 0.0
          %587 = vadd.xlane.f32.xlu0 %v586
          %v588 = vpop.xlane.xlu0 %587
          %v589 = vlog2.pop %v588
          %v590 = vmul.f32 %v589, 0.6931472
          %v591 = vsub.f32 %v579, %v590
          %v592 = vmul.f32 %v574, 1.442695
          %v593 = vpow.pop %v592
          %595 = vrot.lane.b32.xlu0 %v591, 96
          %v596 = vpop.permute.xlu0 %595
          %v598 = vsub.f32 %v574, %v596
          %v599 = vmul.f32 %v593, %v598
          %v600 = vsel %vm562, %v599, 0.0
          %601 = vadd.xlane.f32.xlu0 %v600
          %v602 = vpop.xlane.xlu0 %601
          %v603 = vmul.f32 %v602, %v539
          %v604 = vsel %vm540, %v603, 0.0
          %605 = vadd.xlane.f32.xlu0 %v604
          %v606 = vpop.xlane.xlu0 %605
          %v607 = vrot.slane %v606, 4
          %v608 = vadd.f32 %v606, %v607
          %v609 = vrot.slane %v608, 2
          %v610 = vadd.f32 %v608, %v609
          %v611 = vrot.slane %v610, 1
          %v612 = vadd.f32 %v610, %v611
          %s613 = vtos %v612
          %v614 = vstv %s613
          %v615 = vmax.f32 %v551, 1.0
          %v616 = vrcp.pop %v615
          %v617 = vmul.f32 %v614, %v616
          %vm618 = vcmask 0
          %619 = vst.msk [vmem:[#allocation7] sm:$0x1] %vm618, %v617
          %620 = vst.msk [vmem:[#allocation6] sm:$0x1] %vm618, %v551
          %v621 = vmul.f32 %v561, %v561
          %v622 = vsel %vm562, %v621, 0.0
          %623 = vadd.xlane.f32.xlu0 %v622
          %v624 = vpop.xlane.xlu0 %623
          %v625 = vmax.f32 %v624, 1e-16
          %v626 = vrsqrt.pop %v625
          %v627 = vmul.f32 %v561, %v626
          %629 = vrot.lane.b32.xlu0 %v621, 96
          %v630 = vpop.permute.xlu0 %629
          %v632 = vsel %vm562, %v630, 0.0
          %633 = vadd.xlane.f32.xlu0 %v632
          %v634 = vpop.xlane.xlu0 %633
          %v635 = vmax.f32 %v634, 1e-16
          %v636 = vrsqrt.pop %v635
          %v637 = vmul.f32 %v561, %v636
          %v638 = vsub.f32 0.0, %v637
          %v639 = vsel %vm562, %v627, %v638
          %vm640 = vcmask 523264
          %641 = vst.msk [vmem:[#allocation4] sm:$0xff] %vm640, %v639
        $region56: #{tpu_custom_call.1} parent=35 // pred_fallthru
          _
        // Predicated region
        $region57: #{tpu_custom_call.1} parent=35 // pred_check
          %p642 = pneg %p531
        $region58: #{tpu_custom_call.1} parent=35 // pred_check_branch
          %644 = sbr.rel (%p642) target = $region60
        $region59: #{tpu_custom_call.1} parent=35 // pred_region
          %v645 = vmul.f32 %v371, %v371
          %v646 = vmul.f32 %v372, %v372
          %v647 = vmul.f32 %v373, %v373
          %v648 = vmul.f32 %v374, %v374
          %v649 = vmul.f32 %v375, %v375
          %v650 = vmul.f32 %v376, %v376
          %v651 = vmul.f32 %v377, %v377
          %v652 = vmul.f32 %v378, %v378
          %v653 = vadd.f32 %v645, %v647
          %v654 = vadd.f32 %v653, %v649
          %v655 = vadd.f32 %v654, %v651
          %v656 = vrot.slane %v655, 4
          %v657 = vadd.f32 %v655, %v656
          %v658 = vrot.slane %v657, 2
          %v659 = vadd.f32 %v657, %v658
          %v660 = vrot.slane %v659, 1
          %v661 = vadd.f32 %v659, %v660
          %v662 = vadd.f32 %v646, %v648
          %v663 = vadd.f32 %v662, %v650
          %v664 = vadd.f32 %v663, %v652
          %v665 = vrot.slane %v664, 4
          %v666 = vadd.f32 %v664, %v665
          %v667 = vrot.slane %v666, 2
          %v668 = vadd.f32 %v666, %v667
          %v669 = vrot.slane %v668, 1
          %v670 = vadd.f32 %v668, %v669
          %v671 = vmul.f32 %v379, %v379
          %v672 = vmul.f32 %v380, %v380
          %v673 = vmul.f32 %v381, %v381
          %v674 = vmul.f32 %v382, %v382
          %v675 = vmul.f32 %v383, %v383
          %v676 = vmul.f32 %v384, %v384
          %v677 = vmul.f32 %v385, %v385
          %v678 = vmul.f32 %v386, %v386
          %v679 = vadd.f32 %v671, %v673
          %v680 = vadd.f32 %v679, %v675
          %v681 = vadd.f32 %v680, %v677
          %v682 = vrot.slane %v681, 4
          %v683 = vadd.f32 %v681, %v682
          %v684 = vrot.slane %v683, 2
          %v685 = vadd.f32 %v683, %v684
          %v686 = vrot.slane %v685, 1
          %v687 = vadd.f32 %v685, %v686
          %v688 = vadd.f32 %v672, %v674
          %v689 = vadd.f32 %v688, %v676
          %v690 = vadd.f32 %v689, %v678
          %v691 = vrot.slane %v690, 4
          %v692 = vadd.f32 %v690, %v691
          %v693 = vrot.slane %v692, 2
          %v694 = vadd.f32 %v692, %v693
          %v695 = vrot.slane %v694, 1
          %v696 = vadd.f32 %v694, %v695
          %v697 = vmax.f32 %v661, 1e-16
          %v698 = vmax.f32 %v670, 1e-16
          %v699 = vrsqrt.pop %v697
          %v700 = vrsqrt.pop %v698
          %v702 = vlaneseq
          %v703 = vshrl.u32 %v702, 7
          %v704 = vsub.s32 0, %v703
          %v705 = vrot.slane %v370, %v704
          %v706 = vlaneseq
          %v707 = vshrl.u32 %v706, 7
          %v708 = vsub.s32 1, %v707
          %v709 = vrot.slane %v370, %v708
          %v712 = vmul.f32 %v699, %v705
          %v713 = vmul.f32 %v700, %v709
          %v714 = vlaneseq
          %v715 = vshrl.u32 %v714, 7
          %v716 = vsub.s32 0, %v715
          %v717 = vrot.slane %v712, %v716
          %v718 = vlaneseq
          %v719 = vshrl.u32 %v718, 7
          %v720 = vsub.s32 0, %v719
          %v721 = vrot.slane %v713, %v720
          %v722 = vmul.f32 %v371, %v717
          %v723 = vmul.f32 %v372, %v721
          %v724 = vmul.f32 %v373, %v717
          %v725 = vmul.f32 %v374, %v721
          %v726 = vmul.f32 %v375, %v717
          %v727 = vmul.f32 %v376, %v721
          %v728 = vmul.f32 %v377, %v717
          %v729 = vmul.f32 %v378, %v721
          %v730 = vmax.f32 %v687, 1e-16
          %v731 = vmax.f32 %v696, 1e-16
          %v732 = vrsqrt.pop %v730
          %v733 = vrsqrt.pop %v731
          %v734 = vmul.f32 %v732, %v705
          %v735 = vmul.f32 %v733, %v709
          %v736 = vlaneseq
          %v737 = vshrl.u32 %v736, 7
          %v738 = vsub.s32 0, %v737
          %v739 = vrot.slane %v734, %v738
          %v740 = vlaneseq
          %v741 = vshrl.u32 %v740, 7
          %v742 = vsub.s32 0, %v741
          %v743 = vrot.slane %v735, %v742
          %v744 = vmul.f32 %v379, %v739
          %v745 = vmul.f32 %v380, %v743
          %v746 = vmul.f32 %v381, %v739
          %v747 = vmul.f32 %v382, %v743
          %v748 = vmul.f32 %v383, %v739
          %v749 = vmul.f32 %v384, %v743
          %v750 = vmul.f32 %v385, %v739
          %v751 = vmul.f32 %v386, %v743
          %v752 = vld [vmem:[#allocation4] sm:$0xff]
          %vm753 = vcmask 523264
          %v755 = vsel %vm753, %v752, 0
          %757 = vmatprep.subr.mxu0 %v723
          %758 = vmatpush1.msra.mxu0 %v722
          %759 = vmatprep.subr.mxu0 %v725
          %760 = vmatpush1.msra.mxu0 %v724
          %761 = vmatprep.subr.mxu0 %v727
          %762 = vmatpush1.msra.mxu0 %v726
          %763 = vmatprep.subr.mxu0 %v729
          %764 = vmatpush1.msra.mxu0 %v728
          %765 = vmatprep.subr.mxu0 %v745
          %766 = vmatpush1.msra.mxu0 %v744
          %767 = vmatprep.subr.mxu0 %v747
          %768 = vmatpush1.msra.mxu0 %v746
          %769 = vmatprep.subr.mxu0 %v749
          %770 = vmatpush1.msra.mxu0 %v748
          %771 = vmatprep.subr.mxu0 %v751
          %772 = vmatpush1.msra.mxu0 %v750
          %773 = vmatprep.subr.mxu0 0.0
          %774 = vmatpush1.msra.mxu0 0.0
          %775 = vmatprep.subr.mxu0 0.0
          %776 = vmatpush1.msra.mxu0 0.0
          %777 = vmatprep.subr.mxu0 0.0
          %778 = vmatpush1.msra.mxu0 0.0
          %779 = vmatprep.subr.mxu0 0.0
          %780 = vmatpush1.msra.mxu0 0.0
          %781 = vmatprep.subr.mxu0 0.0
          %782 = vmatpush1.msra.mxu0 0.0
          %783 = vmatprep.subr.mxu0 0.0
          %784 = vmatpush1.msra.mxu0 0.0
          %785 = vmatprep.subr.mxu0 0.0
          %786 = vmatpush1.msra.mxu0 0.0
          %787 = vmatprep.subr.mxu0 0.0
          %788 = vmatpush1.msra.mxu0 0.0
          %789 = vmatprep.subr.mxu0 0.0
          %790 = vmatpush1.msra.mxu0 0.0
          %791 = vmatprep.subr.mxu0 0.0
          %792 = vmatpush1.msra.mxu0 0.0
          %793 = vmatprep.subr.mxu0 0.0
          %794 = vmatpush1.msra.mxu0 0.0
          %795 = vmatprep.subr.mxu0 0.0
          %796 = vmatpush1.msra.mxu0 0.0
          %797 = vmatprep.subr.mxu0 0.0
          %798 = vmatpush1.msra.mxu0 0.0
          %799 = vmatprep.subr.mxu0 0.0
          %800 = vmatpush1.msra.mxu0 0.0
          %801 = vmatprep.subr.mxu0 0.0
          %802 = vmatpush1.msra.mxu0 0.0
          %803 = vmatprep.subr.mxu0 0.0
          %804 = vmatpush1.msra.mxu0 0.0
          %805 = vmatprep.subr.mxu0 0.0
          %806 = vmatpush1.msra.mxu0 0.0
          %807 = vmatprep.subr.mxu0 0.0
          %808 = vmatpush1.msra.mxu0 0.0
          %809 = vmatprep.subr.mxu0 0.0
          %810 = vmatpush1.msra.mxu0 0.0
          %811 = vmatprep.subr.mxu0 0.0
          %812 = vmatpush1.msra.mxu0 0.0
          %813 = vmatprep.subr.mxu0 0.0
          %814 = vmatpush1.msra.mxu0 0.0
          %815 = vmatprep.subr.mxu0 0.0
          %816 = vmatpush1.msra.mxu0 0.0
          %817 = vmatprep.subr.mxu0 0.0
          %818 = vmatpush1.msra.mxu0 0.0
          %819 = vmatprep.subr.mxu0 0.0
          %820 = vmatpush1.msra.mxu0 0.0
          %821 = vmatprep.mubr.f32.mxu0 0.0
          %822 = vmatmul.mubr.f32.gmra.mrb[0].mxu0 %v755
          %v823 = vpop.f32.mrb[0].mxu0
          %v824 = vadd.f32 0.0, %v823
          %v825 = vpop.f32.mrb[0].mxu0
          %v826 = vadd.f32 0.0, %v825
          %827 = vdwg.mxu0
          %v828 = vld [vmem:[#allocation8] sm:$0x1]
          %v829 = vmul.f32 %v824, %v824
          %v830 = vmul.f32 %v826, %v826
          %v831 = vadd.f32 %v829, %v830
          %832 = vadd.xlane.f32.xlu0 %v831
          %v833 = vpop.xlane.xlu0 %832
          %v834 = vrot.slane %v833, 4
          %v835 = vadd.f32 %v833, %v834
          %v836 = vrot.slane %v835, 2
          %v837 = vadd.f32 %v835, %v836
          %v838 = vrot.slane %v837, 1
          %v839 = vadd.f32 %v837, %v838
          %s840 = vtos %v839
          %v841 = vstv %s840
          %v842 = vadd.f32 %v828, %v841
          %vm843 = vcmask 0
          %844 = vst.msk [vmem:[#allocation8] sm:$0x1] %vm843, %v842
        $region60: #{tpu_custom_call.1} parent=35 // pred_fallthru
          _
        // Predicated region
        $region61: #{tpu_custom_call.1} parent=35 // pred_check
          _
        $region62: #{tpu_custom_call.1} parent=35 // pred_check_branch
          %846 = sbr.rel (%p532) target = $region64
        $region63: #{tpu_custom_call.1} parent=35 // pred_region
          %v847 = vld [vmem:[#allocation5] sm:$0x1]
          %v848 = vld [vmem:[#allocation6] sm:$0x1]
          %v849 = vmul.f32 %v847, %v848
          %v850 = vmax.f32 %v849, 1.0
          %v851 = vld [vmem:[#allocation7] sm:$0x1]
          %v852 = vld [vmem:[#allocation8] sm:$0x1]
          %v853 = vrcp.pop %v850
          %v854 = vmul.f32 %v852, %v853
          %v855 = vadd.f32 %v851, %v854
          %v857 = vlaneseq
          %v858 = vshrl.u32 %v857, 7
          %v859 = vsub.s32 0, %v858
          %v860 = vrot.slane %v855, %v859
          %861 = vset.pattern.permute.xlu0 0
          %862 = vperm.xlu0 %861, %v860
          %v863 = vpop.permute.xlu0 %862
          %865 = vst [vmem:[%s330] sm:$0xff] %v863
        $region64: #{tpu_custom_call.1} parent=35 // pred_fallthru
          _
        %s866 = sand.u32 %s163, 1
        %s867 = scalar_lea.sflag [#allocation11], %s866
        %s868 = sand.u32 %s163, 1
        %s869 = smul.addr %s868, 8
        %s870 = scalar_lea.vmem [#allocation14], %s869
        // Predicated region
        $region65: #{tpu_custom_call.1} parent=35 // pred_check
          %p871 = pneg %p173
        $region66: #{tpu_custom_call.1} parent=35 // pred_check_branch
          %873 = sbr.rel (%p871) target = $region68
        $region67: #{tpu_custom_call.1} parent=35 // pred_region
          %s875 = ssub.s32 128, 128
          %876 = vsyncadd %s867, %s875
          %s877 = smul.addr %s29, 128
          %s878 = scalar_lea.hbm %s4, %s877
          %s880 = sshll.u32 %s870, 4
          %s881 = int_to_ptr.vmem [resolvable:$true] %s880
          %883 = dma.vmem_to_hbm [thread:$0]  %s881, 128, %s878, %s867
        $region68: #{tpu_custom_call.1} parent=35 // pred_fallthru
          _
      $region36: #{tpu_custom_call.1} parent=5 // pred_fallthru
        _
      %p884 = scmp.le.s32.totalorder 2, %s19
      // Predicated region
      $region69: #{tpu_custom_call.1} parent=5 // pred_check
        %p885 = pneg %p884
      $region70: #{tpu_custom_call.1} parent=5 // pred_check_branch
        %887 = sbr.rel (%p885) target = $region72
      $region71: #{tpu_custom_call.1} parent=5 // pred_region
        %s888 = ssub.s32 %s19, 2
        // Predicated region
        $region73: #{tpu_custom_call.1} parent=71 // pred_check
          %p889 = pneg %p179
        $region74: #{tpu_custom_call.1} parent=71 // pred_check_branch
          %891 = sbr.rel (%p889) target = $region76
        $region75: #{tpu_custom_call.1} parent=71 // pred_region
          %s892 = sand.u32 %s164, 1
          %s893 = scalar_lea.sflag [#allocation11], %s892
          %s894 = sand.u32 %s164, 1
          %s895 = smul.addr %s894, 8
          %s896 = scalar_lea.vmem [#allocation14], %s895
          %897 = dma.done %s893, 128
        $region76: #{tpu_custom_call.1} parent=71 // pred_fallthru
          _
      $region72: #{tpu_custom_call.1} parent=5 // pred_fallthru
        _
    $region6: #{tpu_custom_call.1} parent=1 // loop_footer
      %s23 = sadd.s32 1, %s19
    $region7: #{tpu_custom_call.1} parent=1 // loop_footer_branch
      %18 = sbr.rel target = $region3
    $region8: #{tpu_custom_call.1} parent=1 // loop_exit
      _
    %898 = vsyncpa [#allocation10], 1
    %s899 = scalar_lea.sflag [#allocation10], 1
    %900 = vsyncpa %s899, 1
    %901 = vsyncpa [#allocation13], 1
    %s902 = scalar_lea.sflag [#allocation13], 1
    %903 = vsyncpa %s902, 1
    %904 = vsyncpa [#allocation11], 1
    %s905 = scalar_lea.sflag [#allocation11], 1
    %906 = vsyncpa %s905, 1

</llo_original>
